<compile_context>
chip_gen: v6e
topology: v6e:2x2x1
jax: 0.10.0
libtpu: 0.0.40
codegen_flags: <defaults>
</compile_context>

<pallas_src>
import functools

import jax
import jax.numpy as jnp
from jax.experimental import pallas as pl
from jax.experimental.pallas import tpu as pltpu

LN_EPS = 1e-12


def _round_up(x, m):
    return ((x + m - 1) // m) * m


def _fused_dense_res_ln_kernel(x_ref, w_ref, b_ref, res_ref, g_ref, beta_ref, o_ref,
                               *, mm_dtype):
    # dense: (rt, K) @ (K, H) on the MXU with f32 accumulation.
    x = x_ref[...].astype(mm_dtype)
    h = jnp.dot(x, w_ref[...], preferred_element_type=jnp.float32)
    h = h + b_ref[...]                       # dense bias (f32)

    # TODO(synk): StableDropout with hidden_dropout_prob > 0 (training mode) would need
    # pltpu.prng_seed / pltpu.prng_random_bits; at inference dropout is the identity.

    # residual add in f32
    h = h + res_ref[...].astype(jnp.float32)

    # TF-style LayerNorm (epsilon inside the sqrt), single-pass statistics.
    u = jnp.mean(h, axis=-1, keepdims=True)
    m2 = jnp.mean(h * h, axis=-1, keepdims=True)
    var = jnp.maximum(m2 - u * u, 0.0)
    norm = (h - u) * jax.lax.rsqrt(var + LN_EPS)
    norm = norm.astype(o_ref.dtype)          # cast back to input dtype (as in the PyTorch spec)
    o_ref[...] = (g_ref[...] * norm + beta_ref[...]).astype(o_ref.dtype)


def bert_self_output(hidden_states, input_states, dense_w_t, dense_b, ln_w, ln_b,
                     *, matmul_dtype=jnp.bfloat16, row_tile=256):
    """Fused dense + dropout(identity) + residual-add + TF LayerNorm.

    hidden_states: (B, S, K)  input to the dense projection
    input_states : (B, S, H)  residual (query_states / attention_output)
    dense_w_t    : (K, H)     dense weight PRE-transposed from PyTorch (H_out, H_in) layout
                              (fold the transpose and the bf16 cast into parameter loading)
    dense_b, ln_w, ln_b: (H,)

    Implements BertSelfOutput (K == hidden_size) and BertOutput (K == intermediate_size).
    # TODO(synk): for H_out beyond ~2-4K add a column-tile grid axis for W^T / output with
    # LN statistics accumulated across column tiles; not needed for BERT hidden sizes.
    """
    B, S, K = hidden_states.shape
    Kw, H = dense_w_t.shape
    assert K == Kw and input_states.shape == (B, S, H)

    N = B * S
    x = hidden_states.reshape(N, K)
    res = input_states.reshape(N, H)

    # Effective row tile: multiple of 8, never larger than needed.
    rt = min(_round_up(max(row_tile, 8), 8), _round_up(N, 8))
    n_pad = _round_up(N, rt)
    if n_pad != N:  # ragged B*S: rows are independent -> pad, compute, slice
        x = jnp.pad(x, ((0, n_pad - N), (0, 0)))
        res = jnp.pad(res, ((0, n_pad - N), (0, 0)))

    wT = dense_w_t.astype(matmul_dtype)   # no-op if pre-cast at parameter-prep time
    b = dense_b.reshape(1, H).astype(jnp.float32)
    g = ln_w.reshape(1, H).astype(jnp.float32)
    beta = ln_b.reshape(1, H).astype(jnp.float32)

    kernel = functools.partial(_fused_dense_res_ln_kernel, mm_dtype=matmul_dtype)
    out_dtype = hidden_states.dtype

    def _run(single_buffer_consts):
        # Constant-index blocks don't need double buffering; Buffered(1) halves their VMEM.
        const_kw = {"pipeline_mode": pl.Buffered(1)} if single_buffer_consts else {}
        grid_spec = pltpu.PrefetchScalarGridSpec(
            num_scalar_prefetch=0,
            grid=(n_pad // rt,),
            in_specs=[
                pl.BlockSpec((rt, K), lambda i: (i, 0)),               # x rows
                pl.BlockSpec((K, H), lambda i: (0, 0), **const_kw),    # W^T (constant)
                pl.BlockSpec((1, H), lambda i: (0, 0), **const_kw),    # dense bias
                pl.BlockSpec((rt, H), lambda i: (i, 0)),               # residual rows
                pl.BlockSpec((1, H), lambda i: (0, 0), **const_kw),    # LN gamma
                pl.BlockSpec((1, H), lambda i: (0, 0), **const_kw),    # LN beta
            ],
            out_specs=pl.BlockSpec((rt, H), lambda i: (i, 0)),
        )
        return pl.pallas_call(
            kernel,
            out_shape=jax.ShapeDtypeStruct((n_pad, H), out_dtype),
            grid_spec=grid_spec,
            compiler_params=pltpu.CompilerParams(
                dimension_semantics=("parallel",),     # lets v7x shard steps over its 2 TCs
                vmem_limit_bytes=32 * 1024 * 1024,     # headroom over v5e's 16 MiB scoped default
            ),
        )(x, wT, b, res, g, beta)

    try:
        out = _run(True)    # single-buffered constant blocks (VMEM saving, esp. v7x)
    except Exception:       # fallback if pipeline_mode / Buffered(1) unsupported in this jax
        out = _run(False)

    if n_pad != N:
        out = out[:N]
    return out.reshape(B, S, H)


def _reference(hidden_states, input_states, dense_w, dense_b, ln_w, ln_b,
               matmul_dtype=None):
    """Pure-JAX mirror of BertSelfOutput.forward (eval mode), PyTorch (H_out, H_in) weight."""
    x, w = hidden_states, dense_w
    if matmul_dtype is not None:
        x, w = x.astype(matmul_dtype), w.astype(matmul_dtype)
    h = jnp.einsum("bsk,hk->bsh", x, w, preferred_element_type=jnp.float32) + dense_b
    h = h + input_states
    u = h.mean(-1, keepdims=True)
    s = ((h - u) ** 2).mean(-1, keepdims=True)
    norm = ((h - u) / jnp.sqrt(s + LN_EPS)).astype(hidden_states.dtype)
    return ln_w * norm + ln_b


if __name__ == "__main__":
    B, S, H = 2, 8, 32  # small shapes consistent with the module (batch=2, seq=8, hidden=32)

    key = jax.random.PRNGKey(0)
    k1, k2, k3, k4, k5, k6 = jax.random.split(key, 6)

    hidden_states = jax.random.normal(k1, (B, S, H), dtype=jnp.float32)   # attention output
    input_states = jax.random.normal(k2, (B, S, H), dtype=jnp.float32)    # residual / query_states

    # Deterministic synthetic parameters (stand-in for a checkpoint load).
    dense_w = jax.random.normal(k3, (H, H), dtype=jnp.float32) * 0.02     # PyTorch (out, in)
    dense_b = jax.random.normal(k4, (H,), dtype=jnp.float32) * 0.02
    ln_w = 1.0 + 0.1 * jax.random.normal(k5, (H,), dtype=jnp.float32)
    ln_b = 0.05 * jax.random.normal(k6, (H,), dtype=jnp.float32)

    # One-time parameter prep (outside the per-call path): pre-transpose (and pre-cast)
    # the dense weight so the kernel sees a lane-contiguous (K, H) operand.
    dense_w_t = dense_w.T
    dense_w_t_bf16 = dense_w_t.astype(jnp.bfloat16)

    ref_exact = _reference(hidden_states, input_states, dense_w, dense_b, ln_w, ln_b)
    ref_bf16mm = _reference(hidden_states, input_states, dense_w, dense_b, ln_w, ln_b,
                            matmul_dtype=jnp.bfloat16)

    # 1) Optimized default path: bf16 MXU matmul, f32 residual + LayerNorm.
    out = bert_self_output(hidden_states, input_states, dense_w_t_bf16, dense_b, ln_w, ln_b)
    out = jax.block_until_ready(out)
    assert out.shape == (B, S, H)
    assert jnp.allclose(out, ref_bf16mm, atol=2e-5, rtol=2e-5), "mismatch vs bf16-matmul reference"
    assert jnp.allclose(out, ref_exact, atol=5e-3, rtol=5e-3), "mismatch vs exact f32 reference"

    # 2) Full-f32 matmul path (exact-dtype option) also compiles and runs.
    out_f32 = bert_self_output(hidden_states, input_states, dense_w_t, dense_b, ln_w, ln_b,
                               matmul_dtype=jnp.float32)
    out_f32 = jax.block_until_ready(out_f32)
    assert jnp.allclose(out_f32, ref_exact, atol=2e-3, rtol=2e-3), "f32 path mismatch"

    # 3) Ragged B*S (S=7 -> N=14): exercises the pad-and-slice path.
    out_ragged = bert_self_output(hidden_states[:, :7], input_states[:, :7],
                                  dense_w_t_bf16, dense_b, ln_w, ln_b)
    out_ragged = jax.block_until_ready(out_ragged)
    assert out_ragged.shape == (B, 7, H)
    assert jnp.allclose(out_ragged, ref_exact[:, :7], atol=5e-3, rtol=5e-3), "ragged mismatch"

    print("KERNEL_OK")
</pallas_src>

<mosaic_0001>
module attributes {stable_mosaic.version = 11 : i64} {
  func.func @_fused_dense_res_ln_kernel(%arg0: i32, %arg1: memref<16x32xf32, #tpu.memory_space<vmem>>, %arg2: memref<32x32xbf16, #tpu.memory_space<vmem>>, %arg3: memref<1x32xf32, #tpu.memory_space<vmem>>, %arg4: memref<16x32xf32, #tpu.memory_space<vmem>>, %arg5: memref<1x32xf32, #tpu.memory_space<vmem>>, %arg6: memref<1x32xf32, #tpu.memory_space<vmem>>, %arg7: memref<16x32xf32, #tpu.memory_space<vmem>>) attributes {dimension_semantics = [#tpu.dimension_semantics<parallel>], iteration_bounds = array<i64: 1>, scalar_prefetch = 0 : i64, scratch_operands = 0 : i64, tpu.core_type = #tpu.core_type<tc>, window_params = [{transform_indices = @transform_0, window_bounds = array<i64: 16, 32>}, {pipeline_mode = #tpu.pipeline_mode<synchronous>, transform_indices = @transform_1, window_bounds = array<i64: 32, 32>}, {pipeline_mode = #tpu.pipeline_mode<synchronous>, transform_indices = @transform_2, window_bounds = array<i64: 1, 32>}, {transform_indices = @transform_3, window_bounds = array<i64: 16, 32>}, {pipeline_mode = #tpu.pipeline_mode<synchronous>, transform_indices = @transform_4, window_bounds = array<i64: 1, 32>}, {pipeline_mode = #tpu.pipeline_mode<synchronous>, transform_indices = @transform_5, window_bounds = array<i64: 1, 32>}, {transform_indices = @transform_6, window_bounds = array<i64: 16, 32>}]} {
    %c0 = arith.constant 0 : index
    %c0_0 = arith.constant 0 : index
    %0 = vector.load %arg1[%c0, %c0_0] : memref<16x32xf32, #tpu.memory_space<vmem>>, vector<16x32xf32>
    %1 = arith.truncf %0 : vector<16x32xf32> to vector<16x32xbf16>
    %c0_1 = arith.constant 0 : index
    %c0_2 = arith.constant 0 : index
    %2 = vector.load %arg2[%c0_1, %c0_2] : memref<32x32xbf16, #tpu.memory_space<vmem>>, vector<32x32xbf16>
    %cst = arith.constant dense<0.000000e+00> : vector<16x32xf32>
    %3 = tpu.matmul %1, %2, %cst {dimension_numbers = #tpu.dot_dimension_numbers<[1], [0], [0], [1], [0, 0, 1, 1], [], []>} : vector<16x32xbf16>, vector<32x32xbf16>, vector<16x32xf32> -> vector<16x32xf32>
    %c0_3 = arith.constant 0 : index
    %c0_4 = arith.constant 0 : index
    %4 = vector.load %arg3[%c0_3, %c0_4] : memref<1x32xf32, #tpu.memory_space<vmem>>, vector<1x32xf32>
    %5 = vector.broadcast %4 : vector<1x32xf32> to vector<16x32xf32>
    %6 = arith.addf %3, %5 : vector<16x32xf32>
    %c0_5 = arith.constant 0 : index
    %c0_6 = arith.constant 0 : index
    %7 = vector.load %arg4[%c0_5, %c0_6] : memref<16x32xf32, #tpu.memory_space<vmem>>, vector<16x32xf32>
    %8 = arith.addf %6, %7 : vector<16x32xf32>
    %cst_7 = arith.constant dense<0.000000e+00> : vector<16xf32>
    %9 = vector.multi_reduction <add>, %8, %cst_7 [1] : vector<16x32xf32> to vector<16xf32>
    %10 = vector.shape_cast %9 : vector<16xf32> to vector<16x1xf32>
    %cst_8 = arith.constant 3.200000e+01 : f32
    %11 = vector.broadcast %cst_8 : f32 to vector<16x1xf32>
    %12 = arith.divf %10, %11 : vector<16x1xf32>
    %13 = arith.mulf %8, %8 : vector<16x32xf32>
    %cst_9 = arith.constant dense<0.000000e+00> : vector<16xf32>
    %14 = vector.multi_reduction <add>, %13, %cst_9 [1] : vector<16x32xf32> to vector<16xf32>
    %15 = vector.shape_cast %14 : vector<16xf32> to vector<16x1xf32>
    %cst_10 = arith.constant 3.200000e+01 : f32
    %16 = vector.broadcast %cst_10 : f32 to vector<16x1xf32>
    %17 = arith.divf %15, %16 : vector<16x1xf32>
    %18 = arith.mulf %12, %12 : vector<16x1xf32>
    %19 = arith.subf %17, %18 : vector<16x1xf32>
    %cst_11 = arith.constant 0.000000e+00 : f32
    %20 = vector.broadcast %cst_11 : f32 to vector<16x1xf32>
    %21 = arith.maximumf %19, %20 : vector<16x1xf32>
    %22 = vector.broadcast %12 : vector<16x1xf32> to vector<16x32xf32>
    %23 = arith.subf %8, %22 : vector<16x32xf32>
    %cst_12 = arith.constant 9.99999996E-13 : f32
    %24 = vector.broadcast %cst_12 : f32 to vector<16x1xf32>
    %25 = arith.addf %21, %24 : vector<16x1xf32>
    %26 = math.rsqrt %25 : vector<16x1xf32>
    %27 = vector.broadcast %26 : vector<16x1xf32> to vector<16x32xf32>
    %28 = arith.mulf %23, %27 : vector<16x32xf32>
    %c0_13 = arith.constant 0 : index
    %c0_14 = arith.constant 0 : index
    %29 = vector.load %arg5[%c0_13, %c0_14] : memref<1x32xf32, #tpu.memory_space<vmem>>, vector<1x32xf32>
    %30 = vector.broadcast %29 : vector<1x32xf32> to vector<16x32xf32>
    %31 = arith.mulf %30, %28 : vector<16x32xf32>
    %c0_15 = arith.constant 0 : index
    %c0_16 = arith.constant 0 : index
    %32 = vector.load %arg6[%c0_15, %c0_16] : memref<1x32xf32, #tpu.memory_space<vmem>>, vector<1x32xf32>
    %33 = vector.broadcast %32 : vector<1x32xf32> to vector<16x32xf32>
    %34 = arith.addf %31, %33 : vector<16x32xf32>
    %c0_17 = arith.constant 0 : index
    %c0_18 = arith.constant 0 : index
    %35 = vector.load %arg7[%c0_17, %c0_18] : memref<16x32xf32, #tpu.memory_space<vmem>>, vector<16x32xf32>
    tpu.vector_store %arg7[%c0_17, %c0_18], %34 {strides = array<i32>} : memref<16x32xf32, #tpu.memory_space<vmem>>, vector<16x32xf32>,
    return
  }
  func.func @transform_0(%arg0: i32) -> (i32, i32) {
    %c0_i32 = arith.constant 0 : i32
    %c0_i32_0 = arith.constant 0 : i32
    return %arg0, %c0_i32 : i32, i32
  }
  func.func @transform_1(%arg0: i32) -> (i32, i32) {
    %c0_i32 = arith.constant 0 : i32
    %c0_i32_0 = arith.constant 0 : i32
    %c0_i32_1 = arith.constant 0 : i32
    return %c0_i32, %c0_i32_0 : i32, i32
  }
  func.func @transform_2(%arg0: i32) -> (i32, i32) {
    %c0_i32 = arith.constant 0 : i32
    %c0_i32_0 = arith.constant 0 : i32
    %c0_i32_1 = arith.constant 0 : i32
    return %c0_i32, %c0_i32_0 : i32, i32
  }
  func.func @transform_3(%arg0: i32) -> (i32, i32) {
    %c0_i32 = arith.constant 0 : i32
    %c0_i32_0 = arith.constant 0 : i32
    return %arg0, %c0_i32 : i32, i32
  }
  func.func @transform_4(%arg0: i32) -> (i32, i32) {
    %c0_i32 = arith.constant 0 : i32
    %c0_i32_0 = arith.constant 0 : i32
    %c0_i32_1 = arith.constant 0 : i32
    return %c0_i32, %c0_i32_0 : i32, i32
  }
  func.func @transform_5(%arg0: i32) -> (i32, i32) {
    %c0_i32 = arith.constant 0 : i32
    %c0_i32_0 = arith.constant 0 : i32
    %c0_i32_1 = arith.constant 0 : i32
    return %c0_i32, %c0_i32_0 : i32, i32
  }
  func.func @transform_6(%arg0: i32) -> (i32, i32) {
    %c0_i32 = arith.constant 0 : i32
    %c0_i32_0 = arith.constant 0 : i32
    return %arg0, %c0_i32 : i32, i32
  }
}

module attributes {stable_mosaic.version = 11 : i64} {
  func.func @_fused_dense_res_ln_kernel(%arg0: i32, %arg1: memref<16x32xf32, #tpu.memory_space<vmem>>, %arg2: memref<32x32xbf16, #tpu.memory_space<vmem>>, %arg3: memref<1x32xf32, #tpu.memory_space<vmem>>, %arg4: memref<16x32xf32, #tpu.memory_space<vmem>>, %arg5: memref<1x32xf32, #tpu.memory_space<vmem>>, %arg6: memref<1x32xf32, #tpu.memory_space<vmem>>, %arg7: memref<16x32xf32, #tpu.memory_space<vmem>>) attributes {dimension_semantics = [#tpu.dimension_semantics<parallel>], iteration_bounds = array<i64: 1>, scalar_prefetch = 0 : i64, scratch_operands = 0 : i64, tpu.core_type = #tpu.core_type<tc>, window_params = [{transform_indices = @transform_0, window_bounds = array<i64: 16, 32>}, {pipeline_mode = #tpu.pipeline_mode<synchronous>, transform_indices = @transform_1, window_bounds = array<i64: 32, 32>}, {pipeline_mode = #tpu.pipeline_mode<synchronous>, transform_indices = @transform_2, window_bounds = array<i64: 1, 32>}, {transform_indices = @transform_3, window_bounds = array<i64: 16, 32>}, {pipeline_mode = #tpu.pipeline_mode<synchronous>, transform_indices = @transform_4, window_bounds = array<i64: 1, 32>}, {pipeline_mode = #tpu.pipeline_mode<synchronous>, transform_indices = @transform_5, window_bounds = array<i64: 1, 32>}, {transform_indices = @transform_6, window_bounds = array<i64: 16, 32>}]} {
    %c0 = arith.constant 0 : index
    %c0_0 = arith.constant 0 : index
    %0 = vector.load %arg1[%c0, %c0_0] : memref<16x32xf32, #tpu.memory_space<vmem>>, vector<16x32xf32>
    %1 = arith.truncf %0 : vector<16x32xf32> to vector<16x32xbf16>
    %c0_1 = arith.constant 0 : index
    %c0_2 = arith.constant 0 : index
    %2 = vector.load %arg2[%c0_1, %c0_2] : memref<32x32xbf16, #tpu.memory_space<vmem>>, vector<32x32xbf16>
    %cst = arith.constant dense<0.000000e+00> : vector<16x32xf32>
    %3 = tpu.matmul %1, %2, %cst {dimension_numbers = #tpu.dot_dimension_numbers<[1], [0], [0], [1], [0, 0, 1, 1], [], []>} : vector<16x32xbf16>, vector<32x32xbf16>, vector<16x32xf32> -> vector<16x32xf32>
    %c0_3 = arith.constant 0 : index
    %c0_4 = arith.constant 0 : index
    %4 = vector.load %arg3[%c0_3, %c0_4] : memref<1x32xf32, #tpu.memory_space<vmem>>, vector<1x32xf32>
    %5 = vector.broadcast %4 : vector<1x32xf32> to vector<16x32xf32>
    %6 = arith.addf %3, %5 : vector<16x32xf32>
    %c0_5 = arith.constant 0 : index
    %c0_6 = arith.constant 0 : index
    %7 = vector.load %arg4[%c0_5, %c0_6] : memref<16x32xf32, #tpu.memory_space<vmem>>, vector<16x32xf32>
    %8 = arith.addf %6, %7 : vector<16x32xf32>
    %cst_7 = arith.constant dense<0.000000e+00> : vector<16xf32>
    %9 = vector.multi_reduction <add>, %8, %cst_7 [1] : vector<16x32xf32> to vector<16xf32>
    %10 = vector.shape_cast %9 : vector<16xf32> to vector<16x1xf32>
    %cst_8 = arith.constant 3.200000e+01 : f32
    %11 = vector.broadcast %cst_8 : f32 to vector<16x1xf32>
    %12 = arith.divf %10, %11 : vector<16x1xf32>
    %13 = arith.mulf %8, %8 : vector<16x32xf32>
    %cst_9 = arith.constant dense<0.000000e+00> : vector<16xf32>
    %14 = vector.multi_reduction <add>, %13, %cst_9 [1] : vector<16x32xf32> to vector<16xf32>
    %15 = vector.shape_cast %14 : vector<16xf32> to vector<16x1xf32>
    %cst_10 = arith.constant 3.200000e+01 : f32
    %16 = vector.broadcast %cst_10 : f32 to vector<16x1xf32>
    %17 = arith.divf %15, %16 : vector<16x1xf32>
    %18 = arith.mulf %12, %12 : vector<16x1xf32>
    %19 = arith.subf %17, %18 : vector<16x1xf32>
    %cst_11 = arith.constant 0.000000e+00 : f32
    %20 = vector.broadcast %cst_11 : f32 to vector<16x1xf32>
    %21 = arith.maximumf %19, %20 : vector<16x1xf32>
    %22 = vector.broadcast %12 : vector<16x1xf32> to vector<16x32xf32>
    %23 = arith.subf %8, %22 : vector<16x32xf32>
    %cst_12 = arith.constant 9.99999996E-13 : f32
    %24 = vector.broadcast %cst_12 : f32 to vector<16x1xf32>
    %25 = arith.addf %21, %24 : vector<16x1xf32>
    %26 = math.rsqrt %25 : vector<16x1xf32>
    %27 = vector.broadcast %26 : vector<16x1xf32> to vector<16x32xf32>
    %28 = arith.mulf %23, %27 : vector<16x32xf32>
    %c0_13 = arith.constant 0 : index
    %c0_14 = arith.constant 0 : index
    %29 = vector.load %arg5[%c0_13, %c0_14] : memref<1x32xf32, #tpu.memory_space<vmem>>, vector<1x32xf32>
    %30 = vector.broadcast %29 : vector<1x32xf32> to vector<16x32xf32>
    %31 = arith.mulf %30, %28 : vector<16x32xf32>
    %c0_15 = arith.constant 0 : index
    %c0_16 = arith.constant 0 : index
    %32 = vector.load %arg6[%c0_15, %c0_16] : memref<1x32xf32, #tpu.memory_space<vmem>>, vector<1x32xf32>
    %33 = vector.broadcast %32 : vector<1x32xf32> to vector<16x32xf32>
    %34 = arith.addf %31, %33 : vector<16x32xf32>
    %c0_17 = arith.constant 0 : index
    %c0_18 = arith.constant 0 : index
    %35 = vector.load %arg7[%c0_17, %c0_18] : memref<16x32xf32, #tpu.memory_space<vmem>>, vector<16x32xf32>
    tpu.vector_store %arg7[%c0_17, %c0_18], %34 {strides = array<i32>} : memref<16x32xf32, #tpu.memory_space<vmem>>, vector<16x32xf32>,
    return
  }
  func.func @transform_0(%arg0: i32) -> (i32, i32) {
    %c0_i32 = arith.constant 0 : i32
    %c0_i32_0 = arith.constant 0 : i32
    return %arg0, %c0_i32 : i32, i32
  }
  func.func @transform_1(%arg0: i32) -> (i32, i32) {
    %c0_i32 = arith.constant 0 : i32
    %c0_i32_0 = arith.constant 0 : i32
    %c0_i32_1 = arith.constant 0 : i32
    return %c0_i32, %c0_i32_0 : i32, i32
  }
  func.func @transform_2(%arg0: i32) -> (i32, i32) {
    %c0_i32 = arith.constant 0 : i32
    %c0_i32_0 = arith.constant 0 : i32
    %c0_i32_1 = arith.constant 0 : i32
    return %c0_i32, %c0_i32_0 : i32, i32
  }
  func.func @transform_3(%arg0: i32) -> (i32, i32) {
    %c0_i32 = arith.constant 0 : i32
    %c0_i32_0 = arith.constant 0 : i32
    return %arg0, %c0_i32 : i32, i32
  }
  func.func @transform_4(%arg0: i32) -> (i32, i32) {
    %c0_i32 = arith.constant 0 : i32
    %c0_i32_0 = arith.constant 0 : i32
    %c0_i32_1 = arith.constant 0 : i32
    return %c0_i32, %c0_i32_0 : i32, i32
  }
  func.func @transform_5(%arg0: i32) -> (i32, i32) {
    %c0_i32 = arith.constant 0 : i32
    %c0_i32_0 = arith.constant 0 : i32
    %c0_i32_1 = arith.constant 0 : i32
    return %c0_i32, %c0_i32_0 : i32, i32
  }
  func.func @transform_6(%arg0: i32) -> (i32, i32) {
    %c0_i32 = arith.constant 0 : i32
    %c0_i32_0 = arith.constant 0 : i32
    return %arg0, %c0_i32 : i32, i32
  }
}

</mosaic_0001>

<llo_original>
// kernel: tpu_custom_call.1
$region0: #{tpu_custom_call.1}
  #allocation0 [shape = 'u32[]', space=smem, size = 0x4, offset = 0x4, fixed_abs, tag = 'smem constant byte address 0x4 - core index']
  #allocation1 [shape = 'u32[144,128]{1,0:T(1,128)}', space=vmem, size = 0x12000, scoped, tag = 'internal scratch']
  %s0 = inlined_call_operand.hbm [shape: f32[16,32], index: 0, kind: input, shape index: {}]
  %s1 = inlined_call_operand.hbm [shape: bf16[32,32], index: 1, kind: input, shape index: {}]
  %s2 = inlined_call_operand.vmem [shape: f32[1,32], index: 2, kind: input, shape index: {}]
  %s3 = inlined_call_operand.hbm [shape: f32[16,32], index: 3, kind: input, shape index: {}]
  %s4 = inlined_call_operand.vmem [shape: f32[1,32], index: 4, kind: input, shape index: {}]
  %s5 = inlined_call_operand.vmem [shape: f32[1,32], index: 5, kind: input, shape index: {}]
  %s6 = inlined_call_operand.hbm [shape: f32[16,32], index: 6, kind: output, shape index: {}]
  %s7 = sld [smem:[#allocation0]]
  $region46: #{tpu_custom_call.1} parent=0
    _
  %s9 = ssub.s32 1, %s7
  %s10 = scalar_select 0, %s9, %s7
  $region1: #{tpu_custom_call.1} parent=0
    #allocation2 [shape = 'u8[8192]{0}', space=vmem, size = 0x2000, scoped, tag = 'input window, operand 0, single buffered']
    #allocation3 [shape = 's32[1]{0}', space=sflag, size = 0x4, scoped, tag = 'scoped memory for tpu_custom_call.1']
    #allocation4 [shape = 's32[1]{0}', space=sflag, size = 0x4, scoped, tag = 'scoped memory for tpu_custom_call.1']
    #allocation5 [shape = 'u8[8192]{0}', space=vmem, size = 0x2000, scoped, tag = 'input window, operand 1, single buffered']
    #allocation6 [shape = 's32[1]{0}', space=sflag, size = 0x4, scoped, tag = 'scoped memory for tpu_custom_call.1']
    #allocation7 [shape = 'u8[8192]{0}', space=vmem, size = 0x2000, scoped, tag = 'input window, operand 3, single buffered']
    #allocation8 [shape = 'u8[8192]{0}', space=vmem, size = 0x2000, scoped, tag = 'output window, operand 0, single buffered']
    %11 = vsyncpa [#allocation3], 0
    %12 = vsyncpa [#allocation6], 0
    %13 = vsyncpa [#allocation4], 0
    // Predicated region
    $region2: #{tpu_custom_call.1} parent=1 // pred_check
      _
    $region3: #{tpu_custom_call.1} parent=1 // pred_check_branch
      %15 = sbr.rel (0) target = $region5
    $region4: #{tpu_custom_call.1} parent=1 // pred_region
      %s17 = ssub.s32 256, 256
      %18 = vsyncadd [#allocation3], %s17
      %s19 = sshll.u32 [#allocation2], 4
      %s20 = int_to_ptr.vmem [resolvable:$true] %s19
      %25 = dma.hbm_to_vmem [thread:$0]  %s0, 256, %s20, [#allocation3], 128, 128, 8
    $region5: #{tpu_custom_call.1} parent=1 // pred_fallthru
      _
    // Predicated region
    $region6: #{tpu_custom_call.1} parent=1 // pred_check
      _
    $region7: #{tpu_custom_call.1} parent=1 // pred_check_branch
      %27 = sbr.rel (0) target = $region9
    $region8: #{tpu_custom_call.1} parent=1 // pred_region
      %s29 = ssub.s32 256, 256
      %30 = vsyncadd [#allocation6], %s29
      %s31 = sshll.u32 [#allocation5], 4
      %s32 = int_to_ptr.vmem [resolvable:$true] %s31
      %37 = dma.hbm_to_vmem [thread:$0]  %s1, 256, %s32, [#allocation6], 64, 64, 4
    $region9: #{tpu_custom_call.1} parent=1 // pred_fallthru
      _
    // Predicated region
    $region10: #{tpu_custom_call.1} parent=1 // pred_check
      _
    $region11: #{tpu_custom_call.1} parent=1 // pred_check_branch
      %39 = sbr.rel (0) target = $region13
    $region12: #{tpu_custom_call.1} parent=1 // pred_region
      _
    $region13: #{tpu_custom_call.1} parent=1 // pred_fallthru
      _
    // Predicated region
    $region14: #{tpu_custom_call.1} parent=1 // pred_check
      _
    $region15: #{tpu_custom_call.1} parent=1 // pred_check_branch
      %41 = sbr.rel (0) target = $region17
    $region16: #{tpu_custom_call.1} parent=1 // pred_region
      %s43 = ssub.s32 256, 256
      %44 = vsyncadd [#allocation6], %s43
      %s45 = sshll.u32 [#allocation7], 4
      %s46 = int_to_ptr.vmem [resolvable:$true] %s45
      %51 = dma.hbm_to_vmem [thread:$0]  %s3, 256, %s46, [#allocation6], 128, 128, 8
    $region17: #{tpu_custom_call.1} parent=1 // pred_fallthru
      _
    // Predicated region
    $region18: #{tpu_custom_call.1} parent=1 // pred_check
      _
    $region19: #{tpu_custom_call.1} parent=1 // pred_check_branch
      %53 = sbr.rel (0) target = $region21
    $region20: #{tpu_custom_call.1} parent=1 // pred_region
      _
    $region21: #{tpu_custom_call.1} parent=1 // pred_fallthru
      _
    // Predicated region
    $region22: #{tpu_custom_call.1} parent=1 // pred_check
      _
    $region23: #{tpu_custom_call.1} parent=1 // pred_check_branch
      %55 = sbr.rel (0) target = $region25
    $region24: #{tpu_custom_call.1} parent=1 // pred_region
      _
    $region25: #{tpu_custom_call.1} parent=1 // pred_fallthru
      _
    // Predicated region
    $region26: #{tpu_custom_call.1} parent=1 // pred_check
      _
    $region27: #{tpu_custom_call.1} parent=1 // pred_check_branch
      %57 = sbr.rel (0) target = $region29
    $region28: #{tpu_custom_call.1} parent=1 // pred_region
      %58 = dma.done [#allocation3], 256
    $region29: #{tpu_custom_call.1} parent=1 // pred_fallthru
      _
    // Predicated region
    $region30: #{tpu_custom_call.1} parent=1 // pred_check
      _
    $region31: #{tpu_custom_call.1} parent=1 // pred_check_branch
      %60 = sbr.rel (0) target = $region33
    $region32: #{tpu_custom_call.1} parent=1 // pred_region
      %61 = dma.done [#allocation6], 256
    $region33: #{tpu_custom_call.1} parent=1 // pred_fallthru
      _
    // Predicated region
    $region34: #{tpu_custom_call.1} parent=1 // pred_check
      _
    $region35: #{tpu_custom_call.1} parent=1 // pred_check_branch
      %63 = sbr.rel (0) target = $region37
    $region36: #{tpu_custom_call.1} parent=1 // pred_region
      %64 = dma.done [#allocation6], 256
    $region37: #{tpu_custom_call.1} parent=1 // pred_fallthru
      _
    %v66 = vld [vmem:[#allocation2] sm:$0xff]
    %v67 = vld [vmem:[#allocation2 + $0x8] sm:$0xff]
    %v68 = vpack.c.bf16 %v67, %v66
    %v69 = vld [vmem:[#allocation5] sm:$0xf]
    %v70 = vld [vmem:[#allocation5 + $0x4] sm:$0xf]
    %v71 = vld [vmem:[#allocation5 + $0x8] sm:$0xf]
    %v72 = vld [vmem:[#allocation5 + $0xc] sm:$0xf]
    %v73 = vld [vmem:[%s2] sm:$0x1]
    %v75 = vlaneseq
    %v76 = vshrl.u32 %v75, 7
    %v77 = vsub.s32 0, %v76
    %v78 = vrot.slane %v73, %v77
    %v84 = vunpack.c.l.b16 %v69
    %v85 = vunpack.c.l.b16 %v70
    %v86 = vunpack.c.l.b16 %v71
    %v87 = vunpack.c.l.b16 %v72
    %v88 = vpack.c.b16 %v85, %v84
    %v89 = vpack.c.b16 %v87, %v86
    %vm92 = vcmask 261120
    %v94 = vsel %vm92, %v68, 0
    %96 = vmatprep.subr.bf16.mxu0 0
    %97 = vmatpush1.bf16.msra.mxu0 0
    %98 = vmatprep.subr.bf16.mxu0 0
    %99 = vmatpush1.bf16.msra.mxu0 0
    %100 = vmatprep.subr.bf16.mxu0 0
    %101 = vmatpush1.bf16.msra.mxu0 0
    %102 = vmatprep.subr.bf16.mxu0 0
    %103 = vmatpush1.bf16.msra.mxu0 0
    %104 = vmatprep.subr.bf16.mxu0 0
    %105 = vmatpush1.bf16.msra.mxu0 0
    %106 = vmatprep.subr.bf16.mxu0 0
    %107 = vmatpush1.bf16.msra.mxu0 0
    %108 = vmatprep.subr.bf16.mxu0 0
    %109 = vmatpush1.bf16.msra.mxu0 %v89
    %110 = vmatprep.subr.bf16.mxu0 0
    %111 = vmatpush1.bf16.msra.mxu0 %v88
    %112 = vmatprep.subr.bf16.mxu0 0
    %113 = vmatpush2.bf16.msra.mxu0 0
    %114 = vmatprep.subr.bf16.mxu0 0
    %115 = vmatpush2.bf16.msra.mxu0 0
    %116 = vmatprep.subr.bf16.mxu0 0
    %117 = vmatpush2.bf16.msra.mxu0 0
    %118 = vmatprep.subr.bf16.mxu0 0
    %119 = vmatpush2.bf16.msra.mxu0 0
    %120 = vmatprep.subr.bf16.mxu0 0
    %121 = vmatpush2.bf16.msra.mxu0 0
    %122 = vmatprep.subr.bf16.mxu0 0
    %123 = vmatpush2.bf16.msra.mxu0 0
    %124 = vmatprep.subr.bf16.mxu0 0
    %125 = vmatpush2.bf16.msra.mxu0 0
    %126 = vmatprep.subr.bf16.mxu0 0
    %127 = vmatpush2.bf16.msra.mxu0 0
    %128 = vmatprep.mubr.bf16.mxu0 0
    %129 = vmatmul.mubr.bf16.gmra.mxu0 %v94
    %v130 = vpop.f32.mrf.mxu0
    %v131 = vadd.f32 %v78, %v130
    %v132 = vpop.f32.mrf.mxu0
    %v133 = vpop.f32.mrf.mxu0
    %v134 = vadd.f32 %v78, %v133
    %v135 = vpop.f32.mrf.mxu0
    %136 = vdwg.mxu0
    %v137 = vld [vmem:[#allocation7] sm:$0xff]
    %v138 = vld [vmem:[#allocation7 + $0x8] sm:$0xff]
    %v139 = vadd.f32 %v131, %v137
    %v140 = vadd.f32 %v134, %v138
    %v141 = vsel %vm92, %v139, 0.0
    %142 = vadd.xlane.f32.xlu0 %v141
    %v143 = vpop.xlane.xlu0 %142
    %v144 = vsel %vm92, %v140, 0.0
    %145 = vadd.xlane.f32.xlu0 %v144
    %v146 = vpop.xlane.xlu0 %145
    %v147 = vrcp.pop 32.0
    %v148 = vmul.f32 %v143, %v147
    %v149 = vmul.f32 %v146, %v147
    %v150 = vmul.f32 %v139, %v139
    %v151 = vmul.f32 %v140, %v140
    %v152 = vsel %vm92, %v150, 0.0
    %153 = vadd.xlane.f32.xlu0 %v152
    %v154 = vpop.xlane.xlu0 %153
    %v155 = vsel %vm92, %v151, 0.0
    %156 = vadd.xlane.f32.xlu0 %v155
    %v157 = vpop.xlane.xlu0 %156
    %v158 = vmul.f32 %v154, %v147
    %v159 = vmul.f32 %v157, %v147
    %v160 = vmul.f32 %v148, %v148
    %v161 = vmul.f32 %v149, %v149
    %v162 = vsub.f32 %v158, %v160
    %v163 = vsub.f32 %v159, %v161
    %v164 = vmax.f32 %v162, 0.0
    %v165 = vmax.f32 %v163, 0.0
    %v166 = vsub.f32 %v139, %v148
    %v167 = vsub.f32 %v140, %v149
    %v168 = vadd.f32 %v164, 1e-12
    %v169 = vadd.f32 %v165, 1e-12
    %v170 = vrsqrt.pop %v168
    %v171 = vrsqrt.pop %v169
    %v172 = vmul.f32 %v166, %v170
    %v173 = vmul.f32 %v167, %v171
    %v174 = vld [vmem:[%s4] sm:$0x1]
    %v176 = vlaneseq
    %v177 = vshrl.u32 %v176, 7
    %v178 = vsub.s32 0, %v177
    %v179 = vrot.slane %v174, %v178
    %v181 = vmul.f32 %v179, %v172
    %v182 = vmul.f32 %v179, %v173
    %v183 = vld [vmem:[%s5] sm:$0x1]
    %v185 = vlaneseq
    %v186 = vshrl.u32 %v185, 7
    %v187 = vsub.s32 0, %v186
    %v188 = vrot.slane %v183, %v187
    %v190 = vadd.f32 %v181, %v188
    %v191 = vadd.f32 %v182, %v188
    %192 = vst.msk [vmem:[#allocation8] sm:$0xff] %vm92, %v190
    %193 = vst.msk [vmem:[#allocation8 + $0x8] sm:$0xff] %vm92, %v191
    // Predicated region
    $region38: #{tpu_custom_call.1} parent=1 // pred_check
      _
    $region39: #{tpu_custom_call.1} parent=1 // pred_check_branch
      %195 = sbr.rel (0) target = $region41
    $region40: #{tpu_custom_call.1} parent=1 // pred_region
      %s197 = ssub.s32 256, 256
      %198 = vsyncadd [#allocation4], %s197
      %s199 = sshll.u32 [#allocation8], 4
      %s200 = int_to_ptr.vmem [resolvable:$true] %s199
      %205 = dma.vmem_to_hbm [thread:$0]  %s200, 256, %s6, [#allocation4], 128, 128, 8
    $region41: #{tpu_custom_call.1} parent=1 // pred_fallthru
      _
    // Predicated region
    $region42: #{tpu_custom_call.1} parent=1 // pred_check
      _
    $region43: #{tpu_custom_call.1} parent=1 // pred_check_branch
      %207 = sbr.rel (0) target = $region45
    $region44: #{tpu_custom_call.1} parent=1 // pred_region
      %208 = dma.done [#allocation4], 256
    $region45: #{tpu_custom_call.1} parent=1 // pred_fallthru
      _
    %209 = vsyncpa [#allocation3], 1
    %210 = vsyncpa [#allocation6], 1
    %211 = vsyncpa [#allocation4], 1

// kernel: tpu_custom_call.1
$region0: #{tpu_custom_call.1}
  #allocation0 [shape = 'u32[]', space=smem, size = 0x4, offset = 0x4, fixed_abs, tag = 'smem constant byte address 0x4 - core index']
  #allocation1 [shape = 'u32[144,128]{1,0:T(1,128)}', space=vmem, size = 0x12000, scoped, tag = 'internal scratch']
  %s0 = inlined_call_operand.hbm [shape: f32[16,32], index: 0, kind: input, shape index: {}]
  %s1 = inlined_call_operand.hbm [shape: bf16[32,32], index: 1, kind: input, shape index: {}]
  %s2 = inlined_call_operand.vmem [shape: f32[1,32], index: 2, kind: input, shape index: {}]
  %s3 = inlined_call_operand.hbm [shape: f32[16,32], index: 3, kind: input, shape index: {}]
  %s4 = inlined_call_operand.vmem [shape: f32[1,32], index: 4, kind: input, shape index: {}]
  %s5 = inlined_call_operand.vmem [shape: f32[1,32], index: 5, kind: input, shape index: {}]
  %s6 = inlined_call_operand.hbm [shape: f32[16,32], index: 6, kind: output, shape index: {}]
  %s7 = sld [smem:[#allocation0]]
  $region46: #{tpu_custom_call.1} parent=0
    _
  %s9 = ssub.s32 1, %s7
  %s10 = scalar_select 0, %s9, %s7
  $region1: #{tpu_custom_call.1} parent=0
    #allocation2 [shape = 'u8[8192]{0}', space=vmem, size = 0x2000, scoped, tag = 'input window, operand 0, single buffered']
    #allocation3 [shape = 's32[1]{0}', space=sflag, size = 0x4, scoped, tag = 'scoped memory for tpu_custom_call.1']
    #allocation4 [shape = 's32[1]{0}', space=sflag, size = 0x4, scoped, tag = 'scoped memory for tpu_custom_call.1']
    #allocation5 [shape = 'u8[8192]{0}', space=vmem, size = 0x2000, scoped, tag = 'input window, operand 1, single buffered']
    #allocation6 [shape = 's32[1]{0}', space=sflag, size = 0x4, scoped, tag = 'scoped memory for tpu_custom_call.1']
    #allocation7 [shape = 'u8[8192]{0}', space=vmem, size = 0x2000, scoped, tag = 'input window, operand 3, single buffered']
    #allocation8 [shape = 'u8[8192]{0}', space=vmem, size = 0x2000, scoped, tag = 'output window, operand 0, single buffered']
    %11 = vsyncpa [#allocation3], 0
    %12 = vsyncpa [#allocation6], 0
    %13 = vsyncpa [#allocation4], 0
    // Predicated region
    $region2: #{tpu_custom_call.1} parent=1 // pred_check
      _
    $region3: #{tpu_custom_call.1} parent=1 // pred_check_branch
      %15 = sbr.rel (0) target = $region5
    $region4: #{tpu_custom_call.1} parent=1 // pred_region
      %s17 = ssub.s32 256, 256
      %18 = vsyncadd [#allocation3], %s17
      %s19 = sshll.u32 [#allocation2], 4
      %s20 = int_to_ptr.vmem [resolvable:$true] %s19
      %25 = dma.hbm_to_vmem [thread:$0]  %s0, 256, %s20, [#allocation3], 128, 128, 8
    $region5: #{tpu_custom_call.1} parent=1 // pred_fallthru
      _
    // Predicated region
    $region6: #{tpu_custom_call.1} parent=1 // pred_check
      _
    $region7: #{tpu_custom_call.1} parent=1 // pred_check_branch
      %27 = sbr.rel (0) target = $region9
    $region8: #{tpu_custom_call.1} parent=1 // pred_region
      %s29 = ssub.s32 256, 256
      %30 = vsyncadd [#allocation6], %s29
      %s31 = sshll.u32 [#allocation5], 4
      %s32 = int_to_ptr.vmem [resolvable:$true] %s31
      %37 = dma.hbm_to_vmem [thread:$0]  %s1, 256, %s32, [#allocation6], 64, 64, 4
    $region9: #{tpu_custom_call.1} parent=1 // pred_fallthru
      _
    // Predicated region
    $region10: #{tpu_custom_call.1} parent=1 // pred_check
      _
    $region11: #{tpu_custom_call.1} parent=1 // pred_check_branch
      %39 = sbr.rel (0) target = $region13
    $region12: #{tpu_custom_call.1} parent=1 // pred_region
      _
    $region13: #{tpu_custom_call.1} parent=1 // pred_fallthru
      _
    // Predicated region
    $region14: #{tpu_custom_call.1} parent=1 // pred_check
      _
    $region15: #{tpu_custom_call.1} parent=1 // pred_check_branch
      %41 = sbr.rel (0) target = $region17
    $region16: #{tpu_custom_call.1} parent=1 // pred_region
      %s43 = ssub.s32 256, 256
      %44 = vsyncadd [#allocation6], %s43
      %s45 = sshll.u32 [#allocation7], 4
      %s46 = int_to_ptr.vmem [resolvable:$true] %s45
      %51 = dma.hbm_to_vmem [thread:$0]  %s3, 256, %s46, [#allocation6], 128, 128, 8
    $region17: #{tpu_custom_call.1} parent=1 // pred_fallthru
      _
    // Predicated region
    $region18: #{tpu_custom_call.1} parent=1 // pred_check
      _
    $region19: #{tpu_custom_call.1} parent=1 // pred_check_branch
      %53 = sbr.rel (0) target = $region21
    $region20: #{tpu_custom_call.1} parent=1 // pred_region
      _
    $region21: #{tpu_custom_call.1} parent=1 // pred_fallthru
      _
    // Predicated region
    $region22: #{tpu_custom_call.1} parent=1 // pred_check
      _
    $region23: #{tpu_custom_call.1} parent=1 // pred_check_branch
      %55 = sbr.rel (0) target = $region25
    $region24: #{tpu_custom_call.1} parent=1 // pred_region
      _
    $region25: #{tpu_custom_call.1} parent=1 // pred_fallthru
      _
    // Predicated region
    $region26: #{tpu_custom_call.1} parent=1 // pred_check
      _
    $region27: #{tpu_custom_call.1} parent=1 // pred_check_branch
      %57 = sbr.rel (0) target = $region29
    $region28: #{tpu_custom_call.1} parent=1 // pred_region
      %58 = dma.done [#allocation3], 256
    $region29: #{tpu_custom_call.1} parent=1 // pred_fallthru
      _
    // Predicated region
    $region30: #{tpu_custom_call.1} parent=1 // pred_check
      _
    $region31: #{tpu_custom_call.1} parent=1 // pred_check_branch
      %60 = sbr.rel (0) target = $region33
    $region32: #{tpu_custom_call.1} parent=1 // pred_region
      %61 = dma.done [#allocation6], 256
    $region33: #{tpu_custom_call.1} parent=1 // pred_fallthru
      _
    // Predicated region
    $region34: #{tpu_custom_call.1} parent=1 // pred_check
      _
    $region35: #{tpu_custom_call.1} parent=1 // pred_check_branch
      %63 = sbr.rel (0) target = $region37
    $region36: #{tpu_custom_call.1} parent=1 // pred_region
      %64 = dma.done [#allocation6], 256
    $region37: #{tpu_custom_call.1} parent=1 // pred_fallthru
      _
    %v66 = vld [vmem:[#allocation2] sm:$0xff]
    %v67 = vld [vmem:[#allocation2 + $0x8] sm:$0xff]
    %v68 = vpack.c.bf16 %v67, %v66
    %v69 = vld [vmem:[#allocation5] sm:$0xf]
    %v70 = vld [vmem:[#allocation5 + $0x4] sm:$0xf]
    %v71 = vld [vmem:[#allocation5 + $0x8] sm:$0xf]
    %v72 = vld [vmem:[#allocation5 + $0xc] sm:$0xf]
    %v73 = vld [vmem:[%s2] sm:$0x1]
    %v75 = vlaneseq
    %v76 = vshrl.u32 %v75, 7
    %v77 = vsub.s32 0, %v76
    %v78 = vrot.slane %v73, %v77
    %v84 = vunpack.c.l.b16 %v69
    %v85 = vunpack.c.l.b16 %v70
    %v86 = vunpack.c.l.b16 %v71
    %v87 = vunpack.c.l.b16 %v72
    %v88 = vpack.c.b16 %v85, %v84
    %v89 = vpack.c.b16 %v87, %v86
    %vm92 = vcmask 261120
    %v94 = vsel %vm92, %v68, 0
    %96 = vmatprep.subr.bf16.mxu0 0
    %97 = vmatpush1.bf16.msra.mxu0 0
    %98 = vmatprep.subr.bf16.mxu0 0
    %99 = vmatpush1.bf16.msra.mxu0 0
    %100 = vmatprep.subr.bf16.mxu0 0
    %101 = vmatpush1.bf16.msra.mxu0 0
    %102 = vmatprep.subr.bf16.mxu0 0
    %103 = vmatpush1.bf16.msra.mxu0 0
    %104 = vmatprep.subr.bf16.mxu0 0
    %105 = vmatpush1.bf16.msra.mxu0 0
    %106 = vmatprep.subr.bf16.mxu0 0
    %107 = vmatpush1.bf16.msra.mxu0 0
    %108 = vmatprep.subr.bf16.mxu0 0
    %109 = vmatpush1.bf16.msra.mxu0 %v89
    %110 = vmatprep.subr.bf16.mxu0 0
    %111 = vmatpush1.bf16.msra.mxu0 %v88
    %112 = vmatprep.subr.bf16.mxu0 0
    %113 = vmatpush2.bf16.msra.mxu0 0
    %114 = vmatprep.subr.bf16.mxu0 0
    %115 = vmatpush2.bf16.msra.mxu0 0
    %116 = vmatprep.subr.bf16.mxu0 0
    %117 = vmatpush2.bf16.msra.mxu0 0
    %118 = vmatprep.subr.bf16.mxu0 0
    %119 = vmatpush2.bf16.msra.mxu0 0
    %120 = vmatprep.subr.bf16.mxu0 0
    %121 = vmatpush2.bf16.msra.mxu0 0
    %122 = vmatprep.subr.bf16.mxu0 0
    %123 = vmatpush2.bf16.msra.mxu0 0
    %124 = vmatprep.subr.bf16.mxu0 0
    %125 = vmatpush2.bf16.msra.mxu0 0
    %126 = vmatprep.subr.bf16.mxu0 0
    %127 = vmatpush2.bf16.msra.mxu0 0
    %128 = vmatprep.mubr.bf16.mxu0 0
    %129 = vmatmul.mubr.bf16.gmra.mxu0 %v94
    %v130 = vpop.f32.mrf.mxu0
    %v131 = vadd.f32 %v78, %v130
    %v132 = vpop.f32.mrf.mxu0
    %v133 = vpop.f32.mrf.mxu0
    %v134 = vadd.f32 %v78, %v133
    %v135 = vpop.f32.mrf.mxu0
    %136 = vdwg.mxu0
    %v137 = vld [vmem:[#allocation7] sm:$0xff]
    %v138 = vld [vmem:[#allocation7 + $0x8] sm:$0xff]
    %v139 = vadd.f32 %v131, %v137
    %v140 = vadd.f32 %v134, %v138
    %v141 = vsel %vm92, %v139, 0.0
    %142 = vadd.xlane.f32.xlu0 %v141
    %v143 = vpop.xlane.xlu0 %142
    %v144 = vsel %vm92, %v140, 0.0
    %145 = vadd.xlane.f32.xlu0 %v144
    %v146 = vpop.xlane.xlu0 %145
    %v147 = vrcp.pop 32.0
    %v148 = vmul.f32 %v143, %v147
    %v149 = vmul.f32 %v146, %v147
    %v150 = vmul.f32 %v139, %v139
    %v151 = vmul.f32 %v140, %v140
    %v152 = vsel %vm92, %v150, 0.0
    %153 = vadd.xlane.f32.xlu0 %v152
    %v154 = vpop.xlane.xlu0 %153
    %v155 = vsel %vm92, %v151, 0.0
    %156 = vadd.xlane.f32.xlu0 %v155
    %v157 = vpop.xlane.xlu0 %156
    %v158 = vmul.f32 %v154, %v147
    %v159 = vmul.f32 %v157, %v147
    %v160 = vmul.f32 %v148, %v148
    %v161 = vmul.f32 %v149, %v149
    %v162 = vsub.f32 %v158, %v160
    %v163 = vsub.f32 %v159, %v161
    %v164 = vmax.f32 %v162, 0.0
    %v165 = vmax.f32 %v163, 0.0
    %v166 = vsub.f32 %v139, %v148
    %v167 = vsub.f32 %v140, %v149
    %v168 = vadd.f32 %v164, 1e-12
    %v169 = vadd.f32 %v165, 1e-12
    %v170 = vrsqrt.pop %v168
    %v171 = vrsqrt.pop %v169
    %v172 = vmul.f32 %v166, %v170
    %v173 = vmul.f32 %v167, %v171
    %v174 = vld [vmem:[%s4] sm:$0x1]
    %v176 = vlaneseq
    %v177 = vshrl.u32 %v176, 7
    %v178 = vsub.s32 0, %v177
    %v179 = vrot.slane %v174, %v178
    %v181 = vmul.f32 %v179, %v172
    %v182 = vmul.f32 %v179, %v173
    %v183 = vld [vmem:[%s5] sm:$0x1]
    %v185 = vlaneseq
    %v186 = vshrl.u32 %v185, 7
    %v187 = vsub.s32 0, %v186
    %v188 = vrot.slane %v183, %v187
    %v190 = vadd.f32 %v181, %v188
    %v191 = vadd.f32 %v182, %v188
    %192 = vst.msk [vmem:[#allocation8] sm:$0xff] %vm92, %v190
    %193 = vst.msk [vmem:[#allocation8 + $0x8] sm:$0xff] %vm92, %v191
    // Predicated region
    $region38: #{tpu_custom_call.1} parent=1 // pred_check
      _
    $region39: #{tpu_custom_call.1} parent=1 // pred_check_branch
      %195 = sbr.rel (0) target = $region41
    $region40: #{tpu_custom_call.1} parent=1 // pred_region
      %s197 = ssub.s32 256, 256
      %198 = vsyncadd [#allocation4], %s197
      %s199 = sshll.u32 [#allocation8], 4
      %s200 = int_to_ptr.vmem [resolvable:$true] %s199
      %205 = dma.vmem_to_hbm [thread:$0]  %s200, 256, %s6, [#allocation4], 128, 128, 8
    $region41: #{tpu_custom_call.1} parent=1 // pred_fallthru
      _
    // Predicated region
    $region42: #{tpu_custom_call.1} parent=1 // pred_check
      _
    $region43: #{tpu_custom_call.1} parent=1 // pred_check_branch
      %207 = sbr.rel (0) target = $region45
    $region44: #{tpu_custom_call.1} parent=1 // pred_region
      %208 = dma.done [#allocation4], 256
    $region45: #{tpu_custom_call.1} parent=1 // pred_fallthru
      _
    %209 = vsyncpa [#allocation3], 1
    %210 = vsyncpa [#allocation6], 1
    %211 = vsyncpa [#allocation4], 1

</llo_original>
